<compile_context>
chip_gen: v7x
topology: tpu7x:2x2x1
jax: 0.10.0
libtpu: 0.0.40
codegen_flags: <defaults>
</compile_context>

<pallas_src>
import functools
import math

import jax
import jax.numpy as jnp
from jax.experimental import pallas as pl
from jax.experimental.pallas import tpu as pltpu

K_IN = 28 * 28     # 784: fc_input contraction dim (multiple of 8; full-dim block)
N_OUT = 10
N_PAD = 128        # lane-dense output tile (unmasked vst); sliced back to 10 outside
LANE = 128
SUBLANE = 8


def _round_up(x, m):
    return (x + m - 1) // m * m


def _tpu_kind():
    try:
        return jax.devices()[0].device_kind.lower()
    except Exception:
        return ""


def _is_v7(kind):
    return ("v7" in kind) or ("7x" in kind)


def _base_tile_m(kind):
    for g in ("v2", "v3", "v4", "v5"):
        if g in kind:
            return 128       # 128-wide MXU: M=128 already fills the systolic array
    return 256               # v6e / v7x: 256-wide MXU


def _choose_tile_m(m, kind):
    base = _base_tile_m(kind)
    # v7x: prefer >=2 batch tiles so megacore sharding gives both TCs work.
    if _is_v7(kind) and m < 2 * base:
        base = 128
    if m <= base:
        return _round_up(max(m, 1), SUBLANE)
    return base


def _vmem_limit_bytes(kind, tile_m, w_pad, layer_num, stream_layers):
    est = 2 * tile_m * K_IN * 4                     # x tile (f32, double-buffered)
    est += K_IN * w_pad * 2 + w_pad * 4             # W_in bf16 + b_in f32 (single buf)
    if layer_num > 0:
        per_layer = w_pad * w_pad * 2 + w_pad * 4
        est += 2 * per_layer if stream_layers else layer_num * per_layer
    est += w_pad * N_PAD * 2 + N_PAD * 4            # W_out bf16 + b_out f32 (single buf)
    est += 2 * tile_m * N_PAD * 2                   # output tile (bf16, double-buffered)
    est += tile_m * w_pad * 4                       # live activation
    cap = (56 << 20) if _is_v7(kind) else (112 << 20)
    return int(min(cap, max(2 * est + (16 << 20), 32 << 20)))


def _should_stream_layers(kind, tile_m, w_pad, layer_num):
    """Stream hidden weights per layer when the resident stack would not fit."""
    if layer_num <= 1:
        return False
    stack = layer_num * (w_pad * w_pad * 2 + w_pad * 4)
    other = (2 * tile_m * K_IN * 4 + K_IN * w_pad * 2 + w_pad * N_PAD * 2
             + 2 * tile_m * N_PAD * 2 + tile_m * w_pad * 4)
    budget = (48 << 20) if _is_v7(kind) else (96 << 20)
    return stack + other > budget


def _bspec(block_shape, index_map, *, invariant=False):
    """BlockSpec; grid-invariant blocks get Buffered(1) (no useless 2nd buffer)."""
    if invariant:
        try:
            return pl.BlockSpec(block_shape, index_map,
                                pipeline_mode=pl.Buffered(1))
        except (AttributeError, TypeError):
            pass  # fall back to default double buffering on older JAX
    return pl.BlockSpec(block_shape, index_map)


# ----------------------------- kernels ------------------------------------ #

def _mlp_kernel_shallow(x_ref, w_in_ref, b_in_ref, w_out_ref, b_out_ref, o_ref):
    """layerNum == 0: relu(x @ W_in + b_in) @ W_out + b_out."""
    x = x_ref[...].astype(jnp.bfloat16)
    y = jnp.dot(x, w_in_ref[...], preferred_element_type=jnp.float32)
    h = jnp.maximum(y + b_in_ref[...], 0.0).astype(jnp.bfloat16)
    y = jnp.dot(h, w_out_ref[...], preferred_element_type=jnp.float32)
    o_ref[...] = (y + b_out_ref[...]).astype(o_ref.dtype)


def _mlp_kernel_resident(x_ref, w_in_ref, b_in_ref, w_h_ref, b_h_ref,
                         w_out_ref, b_out_ref, o_ref, *, layer_num):
    """Whole hidden stack resident in VMEM; one grid step per batch tile."""
    x = x_ref[...].astype(jnp.bfloat16)
    y = jnp.dot(x, w_in_ref[...], preferred_element_type=jnp.float32)
    h = jnp.maximum(y + b_in_ref[...], 0.0).astype(jnp.bfloat16)
    for i in range(layer_num):          # static unroll; activations never leave chip
        y = jnp.dot(h, w_h_ref[i], preferred_element_type=jnp.float32)
        h = jnp.maximum(y + b_h_ref[i], 0.0).astype(jnp.bfloat16)
    y = jnp.dot(h, w_out_ref[...], preferred_element_type=jnp.float32)
    o_ref[...] = (y + b_out_ref[...]).astype(o_ref.dtype)


def _mlp_kernel_streamed(x_ref, w_in_ref, b_in_ref, w_h_ref, b_h_ref,
                         w_out_ref, b_out_ref, o_ref, h_ref):
    """Hidden weights pipelined over an 'arbitrary' layer grid axis.

    The activation is carried across the layer axis in a bf16 VMEM scratch, so
    weight VMEM is capped at ~2x one layer and the next layer's weight DMA
    overlaps the current layer's matmul.
    """
    l = pl.program_id(1)

    @pl.when(l == 0)
    def _input_layer():
        x = x_ref[...].astype(jnp.bfloat16)
        y = jnp.dot(x, w_in_ref[...], preferred_element_type=jnp.float32)
        h_ref[...] = jnp.maximum(y + b_in_ref[...], 0.0).astype(jnp.bfloat16)

    y = jnp.dot(h_ref[...], w_h_ref[0], preferred_element_type=jnp.float32)
    h_ref[...] = jnp.maximum(y + b_h_ref[0], 0.0).astype(jnp.bfloat16)

    @pl.when(l == pl.num_programs(1) - 1)
    def _output_layer():
        y = jnp.dot(h_ref[...], w_out_ref[...], preferred_element_type=jnp.float32)
        o_ref[...] = (y + b_out_ref[...]).astype(o_ref.dtype)


# --------------------------- pallas_call wrapper --------------------------- #

def mlp_pallas(x, w_in, b_in, w_h, b_h, w_out, b_out, *,
               tile_m, layer_num, stream_layers, kind):
    """x: (m_pad, 784) f32/bf16; returns (m_pad, N_PAD) bf16 padded logits."""
    m_pad = x.shape[0]
    w_pad = w_in.shape[1]
    assert m_pad % tile_m == 0
    n_m = m_pad // tile_m
    out_shape = jax.ShapeDtypeStruct((m_pad, N_PAD), jnp.bfloat16)

    if layer_num == 0:
        grid = (n_m,)
        kernel = _mlp_kernel_shallow
        in_specs = [
            _bspec((tile_m, K_IN), lambda i: (i, 0)),
            _bspec((K_IN, w_pad), lambda i: (0, 0), invariant=True),
            _bspec((1, w_pad), lambda i: (0, 0), invariant=True),
            _bspec((w_pad, N_PAD), lambda i: (0, 0), invariant=True),
            _bspec((1, N_PAD), lambda i: (0, 0), invariant=True),
        ]
        out_specs = pl.BlockSpec((tile_m, N_PAD), lambda i: (i, 0))
        scratch_shapes = []
        semantics = ("parallel",)
        operands = (x, w_in, b_in, w_out, b_out)
    elif not stream_layers:
        grid = (n_m,)
        kernel = functools.partial(_mlp_kernel_resident, layer_num=layer_num)
        in_specs = [
            _bspec((tile_m, K_IN), lambda i: (i, 0)),
            _bspec((K_IN, w_pad), lambda i: (0, 0), invariant=True),
            _bspec((1, w_pad), lambda i: (0, 0), invariant=True),
            _bspec((layer_num, w_pad, w_pad), lambda i: (0, 0, 0), invariant=True),
            _bspec((layer_num, 1, w_pad), lambda i: (0, 0, 0), invariant=True),
            _bspec((w_pad, N_PAD), lambda i: (0, 0), invariant=True),
            _bspec((1, N_PAD), lambda i: (0, 0), invariant=True),
        ]
        out_specs = pl.BlockSpec((tile_m, N_PAD), lambda i: (i, 0))
        scratch_shapes = []
        semantics = ("parallel",)
        operands = (x, w_in, b_in, w_h, b_h, w_out, b_out)
    else:
        grid = (n_m, layer_num)
        kernel = _mlp_kernel_streamed
        in_specs = [
            _bspec((tile_m, K_IN), lambda i, l: (i, 0)),
            _bspec((K_IN, w_pad), lambda i, l: (0, 0), invariant=True),
            _bspec((1, w_pad), lambda i, l: (0, 0), invariant=True),
            _bspec((1, w_pad, w_pad), lambda i, l: (l, 0, 0)),   # per-layer stream
            _bspec((1, 1, w_pad), lambda i, l: (l, 0, 0)),
            _bspec((w_pad, N_PAD), lambda i, l: (0, 0), invariant=True),
            _bspec((1, N_PAD), lambda i, l: (0, 0), invariant=True),
        ]
        out_specs = pl.BlockSpec((tile_m, N_PAD), lambda i, l: (i, 0))
        scratch_shapes = [pltpu.VMEM((tile_m, w_pad), jnp.bfloat16)]
        semantics = ("parallel", "arbitrary")
        operands = (x, w_in, b_in, w_h, b_h, w_out, b_out)

    return pl.pallas_call(
        kernel,
        out_shape=out_shape,
        grid=grid,
        in_specs=in_specs,
        out_specs=out_specs,
        scratch_shapes=scratch_shapes,
        compiler_params=pltpu.CompilerParams(
            dimension_semantics=semantics,
            vmem_limit_bytes=_vmem_limit_bytes(kind, tile_m, w_pad, layer_num,
                                               stream_layers),
        ),
    )(*operands)


# ------------------------- params + forward wrapper ------------------------ #

def init_linear_params(key, in_features, out_features, dtype=jnp.float32):
    """PyTorch nn.Linear-style init U(-1/sqrt(in), 1/sqrt(in)); W stored (in, out)."""
    kw, kb = jax.random.split(key)
    bound = 1.0 / math.sqrt(in_features)
    w = jax.random.uniform(kw, (in_features, out_features), dtype, -bound, bound)
    b = jax.random.uniform(kb, (1, out_features), dtype, -bound, bound)
    return w, b


def init_net_params(key, width, layer_num):
    keys = jax.random.split(key, layer_num + 2)
    return {
        "fc_input": init_linear_params(keys[0], K_IN, width),
        "hidden": [init_linear_params(keys[1 + i], width, width)
                   for i in range(layer_num)],
        "fc_output": init_linear_params(keys[layer_num + 1], width, 10),
    }


def prepare_params(params):
    """One-time pad + bf16 cast of all weights (hoisted out of the hot path).

    Zero padding is exact: padded columns contribute exactly zero through every
    matmul and ReLU, so forward semantics are preserved bit-for-bit in f32 math.
    """
    w_in, b_in = params["fc_input"]
    width = w_in.shape[1]
    w_pad = _round_up(max(width, LANE), LANE)
    layer_num = len(params["hidden"])

    w_in_p = jnp.zeros((K_IN, w_pad), jnp.bfloat16)
    w_in_p = w_in_p.at[:, :width].set(w_in.astype(jnp.bfloat16))
    b_in_p = jnp.zeros((1, w_pad), jnp.float32).at[:, :width].set(
        b_in.astype(jnp.float32))

    if layer_num > 0:
        w_h_p = jnp.zeros((layer_num, w_pad, w_pad), jnp.bfloat16)
        b_h_p = jnp.zeros((layer_num, 1, w_pad), jnp.float32)
        for i, (w, b) in enumerate(params["hidden"]):
            w_h_p = w_h_p.at[i, :width, :width].set(w.astype(jnp.bfloat16))
            b_h_p = b_h_p.at[i, :, :width].set(b.astype(jnp.float32))
    else:
        w_h_p, b_h_p = None, None

    w_out, b_out = params["fc_output"]
    w_out_p = jnp.zeros((w_pad, N_PAD), jnp.bfloat16)
    w_out_p = w_out_p.at[:width, :N_OUT].set(w_out.astype(jnp.bfloat16))
    b_out_p = jnp.zeros((1, N_PAD), jnp.float32).at[:, :N_OUT].set(
        b_out.astype(jnp.float32))

    return {"w_in": w_in_p, "b_in": b_in_p, "w_h": w_h_p, "b_h": b_h_p,
            "w_out": w_out_p, "b_out": b_out_p}


def net_forward(prepared, x, *, force_stream_layers=False):
    """Matches Net.forward: view(-1, 784), fc_input+ReLU, hidden+ReLU, fc_output."""
    x2 = x.reshape(-1, K_IN)
    if x2.dtype not in (jnp.float32, jnp.bfloat16):
        x2 = x2.astype(jnp.float32)
    m = x2.shape[0]

    w_h = prepared["w_h"]
    layer_num = 0 if w_h is None else w_h.shape[0]
    w_pad = prepared["w_in"].shape[1]

    kind = _tpu_kind()
    tile_m = _choose_tile_m(m, kind)
    m_pad = _round_up(m, tile_m)
    if m_pad != m:                       # zero rows, sliced off below
        x2 = jnp.pad(x2, ((0, m_pad - m), (0, 0)))

    stream_layers = (layer_num > 0) and (
        force_stream_layers or _should_stream_layers(kind, tile_m, w_pad, layer_num))

    out = mlp_pallas(x2, prepared["w_in"], prepared["b_in"], w_h, prepared["b_h"],
                     prepared["w_out"], prepared["b_out"],
                     tile_m=tile_m, layer_num=layer_num,
                     stream_layers=stream_layers, kind=kind)
    return out[:m, :N_OUT].astype(jnp.float32)


def ref_forward(params, x):
    """Pure-JAX reference with the same bf16-operand / f32-accumulate math."""
    h = x.reshape(-1, K_IN).astype(jnp.float32)

    def lin(h, w, b, relu):
        y = jnp.dot(h.astype(jnp.bfloat16), w.astype(jnp.bfloat16),
                    preferred_element_type=jnp.float32) + b.astype(jnp.float32)
        return jnp.maximum(y, 0.0) if relu else y

    w, b = params["fc_input"]
    h = lin(h, w, b, True)
    for w, b in params["hidden"]:
        h = lin(h, w, b, True)
    w, b = params["fc_output"]
    return lin(h, w, b, False)


if __name__ == "__main__":
    key = jax.random.PRNGKey(0)
    k_p1, k_x1, k_p2, k_x2 = jax.random.split(key, 4)

    # Config 1 (resident-weights path): width=32, layerNum=2, MNIST-style input.
    width, layer_num, batch = 32, 2, 8
    params = init_net_params(k_p1, width, layer_num)
    prepared = prepare_params(params)          # one-time pad/cast (hoisted)
    x = jax.random.normal(k_x1, (batch, 1, 28, 28), dtype=jnp.float32)

    fwd = jax.jit(net_forward)
    out = jax.block_until_ready(fwd(prepared, x))
    assert out.shape == (batch, 10), out.shape
    ref = ref_forward(params, x)
    err = float(jnp.max(jnp.abs(out - ref)))
    assert jnp.allclose(out, ref, atol=2e-2, rtol=2e-2), err

    # Config 2: force the layer-streaming path (used automatically for configs
    # whose hidden stack would not fit the per-TC VMEM budget, e.g. on v7x).
    width2, layer_num2, batch2 = 256, 3, 16
    params2 = init_net_params(k_p2, width2, layer_num2)
    prepared2 = prepare_params(params2)
    x2 = jax.random.normal(k_x2, (batch2, 1, 28, 28), dtype=jnp.float32)
    fwd_stream = jax.jit(functools.partial(net_forward, force_stream_layers=True))
    out2 = jax.block_until_ready(fwd_stream(prepared2, x2))
    assert out2.shape == (batch2, 10), out2.shape
    ref2 = ref_forward(params2, x2)
    err2 = float(jnp.max(jnp.abs(out2 - ref2)))
    assert jnp.allclose(out2, ref2, atol=2e-2, rtol=2e-2), err2

    print("KERNEL_OK")
</pallas_src>

<mosaic_0001>
module attributes {stable_mosaic.version = 11 : i64} {
  func.func @_mlp_kernel_resident(%arg0: i32, %arg1: memref<8x784xf32, #tpu.memory_space<vmem>>, %arg2: memref<784x128xbf16, #tpu.memory_space<vmem>>, %arg3: memref<1x128xf32, #tpu.memory_space<vmem>>, %arg4: memref<2x128x128xbf16, #tpu.memory_space<vmem>>, %arg5: memref<2x1x128xf32, #tpu.memory_space<vmem>>, %arg6: memref<128x128xbf16, #tpu.memory_space<vmem>>, %arg7: memref<1x128xf32, #tpu.memory_space<vmem>>, %arg8: memref<8x128xbf16, #tpu.memory_space<vmem>>) attributes {dimension_semantics = [#tpu.dimension_semantics<parallel>], iteration_bounds = array<i64: 1>, scalar_prefetch = 0 : i64, scratch_operands = 0 : i64, tpu.core_type = #tpu.core_type<tc>, window_params = [{transform_indices = @transform_0, window_bounds = array<i64: 8, 784>}, {pipeline_mode = #tpu.pipeline_mode<synchronous>, transform_indices = @transform_1, window_bounds = array<i64: 784, 128>}, {pipeline_mode = #tpu.pipeline_mode<synchronous>, transform_indices = @transform_2, window_bounds = array<i64: 1, 128>}, {pipeline_mode = #tpu.pipeline_mode<synchronous>, transform_indices = @transform_3, window_bounds = array<i64: 2, 128, 128>}, {pipeline_mode = #tpu.pipeline_mode<synchronous>, transform_indices = @transform_4, window_bounds = array<i64: 2, 1, 128>}, {pipeline_mode = #tpu.pipeline_mode<synchronous>, transform_indices = @transform_5, window_bounds = array<i64: 128, 128>}, {pipeline_mode = #tpu.pipeline_mode<synchronous>, transform_indices = @transform_6, window_bounds = array<i64: 1, 128>}, {transform_indices = @transform_7, window_bounds = array<i64: 8, 128>}]} {
    %c0 = arith.constant 0 : index
    %c0_0 = arith.constant 0 : index
    %0 = vector.load %arg1[%c0, %c0_0] : memref<8x784xf32, #tpu.memory_space<vmem>>, vector<8x784xf32>
    %1 = arith.truncf %0 : vector<8x784xf32> to vector<8x784xbf16>
    %c0_1 = arith.constant 0 : index
    %c0_2 = arith.constant 0 : index
    %2 = vector.load %arg2[%c0_1, %c0_2] : memref<784x128xbf16, #tpu.memory_space<vmem>>, vector<784x128xbf16>
    %cst = arith.constant dense<0.000000e+00> : vector<8x128xf32>
    %3 = tpu.matmul %1, %2, %cst {dimension_numbers = #tpu.dot_dimension_numbers<[1], [0], [0], [1], [0, 0, 1, 1], [], []>} : vector<8x784xbf16>, vector<784x128xbf16>, vector<8x128xf32> -> vector<8x128xf32>
    %c0_3 = arith.constant 0 : index
    %c0_4 = arith.constant 0 : index
    %4 = vector.load %arg3[%c0_3, %c0_4] : memref<1x128xf32, #tpu.memory_space<vmem>>, vector<1x128xf32>
    %5 = vector.broadcast %4 : vector<1x128xf32> to vector<8x128xf32>
    %6 = arith.addf %3, %5 : vector<8x128xf32>
    %cst_5 = arith.constant 0.000000e+00 : f32
    %7 = vector.broadcast %cst_5 : f32 to vector<8x128xf32>
    %8 = arith.maximumf %6, %7 : vector<8x128xf32>
    %9 = arith.truncf %8 : vector<8x128xf32> to vector<8x128xbf16>
    %c0_6 = arith.constant 0 : index
    %c0_7 = arith.constant 0 : index
    %c0_8 = arith.constant 0 : index
    %10 = vector.load %arg4[%c0_6, %c0_7, %c0_8] : memref<2x128x128xbf16, #tpu.memory_space<vmem>>, vector<1x128x128xbf16>
    %11 = vector.shape_cast %10 : vector<1x128x128xbf16> to vector<128x128xbf16>
    %cst_9 = arith.constant dense<0.000000e+00> : vector<8x128xf32>
    %12 = tpu.matmul %9, %11, %cst_9 {dimension_numbers = #tpu.dot_dimension_numbers<[1], [0], [0], [1], [0, 0, 1, 1], [], []>} : vector<8x128xbf16>, vector<128x128xbf16>, vector<8x128xf32> -> vector<8x128xf32>
    %c0_10 = arith.constant 0 : index
    %c0_11 = arith.constant 0 : index
    %c0_12 = arith.constant 0 : index
    %13 = vector.load %arg5[%c0_10, %c0_11, %c0_12] : memref<2x1x128xf32, #tpu.memory_space<vmem>>, vector<1x1x128xf32>
    %14 = vector.shape_cast %13 : vector<1x1x128xf32> to vector<1x128xf32>
    %15 = vector.broadcast %14 : vector<1x128xf32> to vector<8x128xf32>
    %16 = arith.addf %12, %15 : vector<8x128xf32>
    %cst_13 = arith.constant 0.000000e+00 : f32
    %17 = vector.broadcast %cst_13 : f32 to vector<8x128xf32>
    %18 = arith.maximumf %16, %17 : vector<8x128xf32>
    %19 = arith.truncf %18 : vector<8x128xf32> to vector<8x128xbf16>
    %c1 = arith.constant 1 : index
    %c0_14 = arith.constant 0 : index
    %c0_15 = arith.constant 0 : index
    %20 = vector.load %arg4[%c1, %c0_14, %c0_15] : memref<2x128x128xbf16, #tpu.memory_space<vmem>>, vector<1x128x128xbf16>
    %21 = vector.shape_cast %20 : vector<1x128x128xbf16> to vector<128x128xbf16>
    %cst_16 = arith.constant dense<0.000000e+00> : vector<8x128xf32>
    %22 = tpu.matmul %19, %21, %cst_16 {dimension_numbers = #tpu.dot_dimension_numbers<[1], [0], [0], [1], [0, 0, 1, 1], [], []>} : vector<8x128xbf16>, vector<128x128xbf16>, vector<8x128xf32> -> vector<8x128xf32>
    %c1_17 = arith.constant 1 : index
    %c0_18 = arith.constant 0 : index
    %c0_19 = arith.constant 0 : index
    %23 = vector.load %arg5[%c1_17, %c0_18, %c0_19] : memref<2x1x128xf32, #tpu.memory_space<vmem>>, vector<1x1x128xf32>
    %24 = vector.shape_cast %23 : vector<1x1x128xf32> to vector<1x128xf32>
    %25 = vector.broadcast %24 : vector<1x128xf32> to vector<8x128xf32>
    %26 = arith.addf %22, %25 : vector<8x128xf32>
    %cst_20 = arith.constant 0.000000e+00 : f32
    %27 = vector.broadcast %cst_20 : f32 to vector<8x128xf32>
    %28 = arith.maximumf %26, %27 : vector<8x128xf32>
    %29 = arith.truncf %28 : vector<8x128xf32> to vector<8x128xbf16>
    %c0_21 = arith.constant 0 : index
    %c0_22 = arith.constant 0 : index
    %30 = vector.load %arg6[%c0_21, %c0_22] : memref<128x128xbf16, #tpu.memory_space<vmem>>, vector<128x128xbf16>
    %cst_23 = arith.constant dense<0.000000e+00> : vector<8x128xf32>
    %31 = tpu.matmul %29, %30, %cst_23 {dimension_numbers = #tpu.dot_dimension_numbers<[1], [0], [0], [1], [0, 0, 1, 1], [], []>} : vector<8x128xbf16>, vector<128x128xbf16>, vector<8x128xf32> -> vector<8x128xf32>
    %c0_24 = arith.constant 0 : index
    %c0_25 = arith.constant 0 : index
    %32 = vector.load %arg7[%c0_24, %c0_25] : memref<1x128xf32, #tpu.memory_space<vmem>>, vector<1x128xf32>
    %33 = vector.broadcast %32 : vector<1x128xf32> to vector<8x128xf32>
    %34 = arith.addf %31, %33 : vector<8x128xf32>
    %35 = arith.truncf %34 : vector<8x128xf32> to vector<8x128xbf16>
    %c0_26 = arith.constant 0 : index
    %c0_27 = arith.constant 0 : index
    %36 = vector.load %arg8[%c0_26, %c0_27] : memref<8x128xbf16, #tpu.memory_space<vmem>>, vector<8x128xbf16>
    tpu.vector_store %arg8[%c0_26, %c0_27], %35 {strides = array<i32>} : memref<8x128xbf16, #tpu.memory_space<vmem>>, vector<8x128xbf16>,
    return
  }
  func.func @transform_0(%arg0: i32) -> (i32, i32) {
    %c0_i32 = arith.constant 0 : i32
    %c0_i32_0 = arith.constant 0 : i32
    return %arg0, %c0_i32 : i32, i32
  }
  func.func @transform_1(%arg0: i32) -> (i32, i32) {
    %c0_i32 = arith.constant 0 : i32
    %c0_i32_0 = arith.constant 0 : i32
    %c0_i32_1 = arith.constant 0 : i32
    return %c0_i32, %c0_i32_0 : i32, i32
  }
  func.func @transform_2(%arg0: i32) -> (i32, i32) {
    %c0_i32 = arith.constant 0 : i32
    %c0_i32_0 = arith.constant 0 : i32
    %c0_i32_1 = arith.constant 0 : i32
    return %c0_i32, %c0_i32_0 : i32, i32
  }
  func.func @transform_3(%arg0: i32) -> (i32, i32, i32) {
    %c0_i32 = arith.constant 0 : i32
    %c0_i32_0 = arith.constant 0 : i32
    %c0_i32_1 = arith.constant 0 : i32
    %c0_i32_2 = arith.constant 0 : i32
    return %c0_i32, %c0_i32_0, %c0_i32_1 : i32, i32, i32
  }
  func.func @transform_4(%arg0: i32) -> (i32, i32, i32) {
    %c0_i32 = arith.constant 0 : i32
    %c0_i32_0 = arith.constant 0 : i32
    %c0_i32_1 = arith.constant 0 : i32
    %c0_i32_2 = arith.constant 0 : i32
    return %c0_i32, %c0_i32_0, %c0_i32_1 : i32, i32, i32
  }
  func.func @transform_5(%arg0: i32) -> (i32, i32) {
    %c0_i32 = arith.constant 0 : i32
    %c0_i32_0 = arith.constant 0 : i32
    %c0_i32_1 = arith.constant 0 : i32
    return %c0_i32, %c0_i32_0 : i32, i32
  }
  func.func @transform_6(%arg0: i32) -> (i32, i32) {
    %c0_i32 = arith.constant 0 : i32
    %c0_i32_0 = arith.constant 0 : i32
    %c0_i32_1 = arith.constant 0 : i32
    return %c0_i32, %c0_i32_0 : i32, i32
  }
  func.func @transform_7(%arg0: i32) -> (i32, i32) {
    %c0_i32 = arith.constant 0 : i32
    %c0_i32_0 = arith.constant 0 : i32
    return %arg0, %c0_i32 : i32, i32
  }
}

</mosaic_0001>

<llo_original>
// kernel: net_forward.1
$region0: #{net_forward.1}
  #allocation0 [shape = 'u32[]', space=smem, size = 0x4, offset = 0x4, fixed_abs, tag = 'smem constant byte address 0x4 - core index']
  #allocation1 [shape = 'u32[144,128]{1,0:T(1,128)}', space=vmem, size = 0x12000, scoped, tag = 'internal scratch']
  %s0 = inlined_call_operand.vmem [shape: f32[8,784], index: 0, kind: input, shape index: {}]
  %s1 = inlined_call_operand.vmem [shape: bf16[784,128], index: 1, kind: input, shape index: {}]
  %s2 = inlined_call_operand.vmem [shape: f32[1,128], index: 2, kind: input, shape index: {}]
  %s3 = inlined_call_operand.vmem [shape: bf16[2,128,128], index: 3, kind: input, shape index: {}]
  %s4 = inlined_call_operand.vmem [shape: f32[2,1,128], index: 4, kind: input, shape index: {}]
  %s5 = inlined_call_operand.vmem [shape: bf16[128,128], index: 5, kind: input, shape index: {}]
  %s6 = inlined_call_operand.vmem [shape: f32[1,128], index: 6, kind: input, shape index: {}]
  %s7 = inlined_call_operand.vmem [shape: bf16[8,128], index: 7, kind: output, shape index: {}]
  %s8 = sld [smem:[#allocation0]]
  $region38: #{net_forward.1} parent=0
    _
  %s10 = ssub.s32 1, %s8
  %s11 = scalar_select 0, %s10, %s8
  // Predicated region
  $region2: #{net_forward.1} parent=0 // pred_check
    _
  $region3: #{net_forward.1} parent=0 // pred_check_branch
    %13 = sbr.rel (0) target = $region5
  $region4: #{net_forward.1} parent=0 // pred_region
    _
  $region5: #{net_forward.1} parent=0 // pred_fallthru
    _
  // Predicated region
  $region6: #{net_forward.1} parent=0 // pred_check
    _
  $region7: #{net_forward.1} parent=0 // pred_check_branch
    %15 = sbr.rel (0) target = $region9
  $region8: #{net_forward.1} parent=0 // pred_region
    _
  $region9: #{net_forward.1} parent=0 // pred_fallthru
    _
  // Predicated region
  $region10: #{net_forward.1} parent=0 // pred_check
    _
  $region11: #{net_forward.1} parent=0 // pred_check_branch
    %17 = sbr.rel (0) target = $region13
  $region12: #{net_forward.1} parent=0 // pred_region
    _
  $region13: #{net_forward.1} parent=0 // pred_fallthru
    _
  // Predicated region
  $region14: #{net_forward.1} parent=0 // pred_check
    _
  $region15: #{net_forward.1} parent=0 // pred_check_branch
    %19 = sbr.rel (0) target = $region17
  $region16: #{net_forward.1} parent=0 // pred_region
    _
  $region17: #{net_forward.1} parent=0 // pred_fallthru
    _
  // Predicated region
  $region18: #{net_forward.1} parent=0 // pred_check
    _
  $region19: #{net_forward.1} parent=0 // pred_check_branch
    %21 = sbr.rel (0) target = $region21
  $region20: #{net_forward.1} parent=0 // pred_region
    _
  $region21: #{net_forward.1} parent=0 // pred_fallthru
    _
  // Predicated region
  $region22: #{net_forward.1} parent=0 // pred_check
    _
  $region23: #{net_forward.1} parent=0 // pred_check_branch
    %23 = sbr.rel (0) target = $region25
  $region24: #{net_forward.1} parent=0 // pred_region
    _
  $region25: #{net_forward.1} parent=0 // pred_fallthru
    _
  // Predicated region
  $region26: #{net_forward.1} parent=0 // pred_check
    _
  $region27: #{net_forward.1} parent=0 // pred_check_branch
    %25 = sbr.rel (0) target = $region29
  $region28: #{net_forward.1} parent=0 // pred_region
    _
  $region29: #{net_forward.1} parent=0 // pred_fallthru
    _
  %v27 = vld [vmem:[%s0] sm:$0xff]
  %v28 = vld [vmem:[%s0 + $0x8] sm:$0xff]
  %v29 = vld [vmem:[%s0 + $0x10] sm:$0xff]
  %v30 = vld [vmem:[%s0 + $0x18] sm:$0xff]
  %v31 = vld [vmem:[%s0 + $0x20] sm:$0xff]
  %v32 = vld [vmem:[%s0 + $0x28] sm:$0xff]
  %v33 = vld [vmem:[%s0 + $0x30] sm:$0xff]
  %v34 = vpack.c.bf16 %v27, %v27
  %v35 = vpack.c.bf16 %v28, %v28
  %v36 = vpack.c.bf16 %v29, %v29
  %v37 = vpack.c.bf16 %v30, %v30
  %v38 = vpack.c.bf16 %v31, %v31
  %v39 = vpack.c.bf16 %v32, %v32
  %v40 = vpack.c.bf16 %v33, %v33
  %v41 = vld [vmem:[%s1] sm:$0xf]
  %v42 = vld [vmem:[%s1 + $0x4] sm:$0xf]
  %v43 = vld [vmem:[%s1 + $0x8] sm:$0xf]
  %v44 = vld [vmem:[%s1 + $0xc] sm:$0xf]
  %v45 = vld [vmem:[%s1 + $0x10] sm:$0xf]
  %v46 = vld [vmem:[%s1 + $0x14] sm:$0xf]
  %v47 = vld [vmem:[%s1 + $0x18] sm:$0xf]
  %v48 = vld [vmem:[%s1 + $0x1c] sm:$0xf]
  %v49 = vld [vmem:[%s1 + $0x20] sm:$0xf]
  %v50 = vld [vmem:[%s1 + $0x24] sm:$0xf]
  %v51 = vld [vmem:[%s1 + $0x28] sm:$0xf]
  %v52 = vld [vmem:[%s1 + $0x2c] sm:$0xf]
  %v53 = vld [vmem:[%s1 + $0x30] sm:$0xf]
  %v54 = vld [vmem:[%s1 + $0x34] sm:$0xf]
  %v55 = vld [vmem:[%s1 + $0x38] sm:$0xf]
  %v56 = vld [vmem:[%s1 + $0x3c] sm:$0xf]
  %v57 = vld [vmem:[%s1 + $0x40] sm:$0xf]
  %v58 = vld [vmem:[%s1 + $0x44] sm:$0xf]
  %v59 = vld [vmem:[%s1 + $0x48] sm:$0xf]
  %v60 = vld [vmem:[%s1 + $0x4c] sm:$0xf]
  %v61 = vld [vmem:[%s1 + $0x50] sm:$0xf]
  %v62 = vld [vmem:[%s1 + $0x54] sm:$0xf]
  %v63 = vld [vmem:[%s1 + $0x58] sm:$0xf]
  %v64 = vld [vmem:[%s1 + $0x5c] sm:$0xf]
  %v65 = vld [vmem:[%s1 + $0x60] sm:$0xf]
  %v66 = vld [vmem:[%s1 + $0x64] sm:$0xf]
  %v67 = vld [vmem:[%s1 + $0x68] sm:$0xf]
  %v68 = vld [vmem:[%s1 + $0x6c] sm:$0xf]
  %v69 = vld [vmem:[%s1 + $0x70] sm:$0xf]
  %v70 = vld [vmem:[%s1 + $0x74] sm:$0xf]
  %v71 = vld [vmem:[%s1 + $0x78] sm:$0xf]
  %v72 = vld [vmem:[%s1 + $0x7c] sm:$0xf]
  %v73 = vld [vmem:[%s1 + $0x80] sm:$0xf]
  %v74 = vld [vmem:[%s1 + $0x84] sm:$0xf]
  %v75 = vld [vmem:[%s1 + $0x88] sm:$0xf]
  %v76 = vld [vmem:[%s1 + $0x8c] sm:$0xf]
  %v77 = vld [vmem:[%s1 + $0x90] sm:$0xf]
  %v78 = vld [vmem:[%s1 + $0x94] sm:$0xf]
  %v79 = vld [vmem:[%s1 + $0x98] sm:$0xf]
  %v80 = vld [vmem:[%s1 + $0x9c] sm:$0xf]
  %v81 = vld [vmem:[%s1 + $0xa0] sm:$0xf]
  %v82 = vld [vmem:[%s1 + $0xa4] sm:$0xf]
  %v83 = vld [vmem:[%s1 + $0xa8] sm:$0xf]
  %v84 = vld [vmem:[%s1 + $0xac] sm:$0xf]
  %v85 = vld [vmem:[%s1 + $0xb0] sm:$0xf]
  %v86 = vld [vmem:[%s1 + $0xb4] sm:$0xf]
  %v87 = vld [vmem:[%s1 + $0xb8] sm:$0xf]
  %v88 = vld [vmem:[%s1 + $0xbc] sm:$0xf]
  %v89 = vld [vmem:[%s1 + $0xc0] sm:$0xf]
  %v90 = vld [vmem:[%s1 + $0xc4] sm:$0xf]
  %v91 = vld [vmem:[%s1 + $0xc8] sm:$0xf]
  %v92 = vld [vmem:[%s1 + $0xcc] sm:$0xf]
  %v93 = vld [vmem:[%s1 + $0xd0] sm:$0xf]
  %v94 = vld [vmem:[%s1 + $0xd4] sm:$0xf]
  %v95 = vld [vmem:[%s1 + $0xd8] sm:$0xf]
  %v96 = vld [vmem:[%s1 + $0xdc] sm:$0xf]
  %v97 = vld [vmem:[%s1 + $0xe0] sm:$0xf]
  %v98 = vld [vmem:[%s1 + $0xe4] sm:$0xf]
  %v99 = vld [vmem:[%s1 + $0xe8] sm:$0xf]
  %v100 = vld [vmem:[%s1 + $0xec] sm:$0xf]
  %v101 = vld [vmem:[%s1 + $0xf0] sm:$0xf]
  %v102 = vld [vmem:[%s1 + $0xf4] sm:$0xf]
  %v103 = vld [vmem:[%s1 + $0xf8] sm:$0xf]
  %v104 = vld [vmem:[%s1 + $0xfc] sm:$0xf]
  %v105 = vld [vmem:[%s1 + $0x100] sm:$0xf]
  %v106 = vld [vmem:[%s1 + $0x104] sm:$0xf]
  %v107 = vld [vmem:[%s1 + $0x108] sm:$0xf]
  %v108 = vld [vmem:[%s1 + $0x10c] sm:$0xf]
  %v109 = vld [vmem:[%s1 + $0x110] sm:$0xf]
  %v110 = vld [vmem:[%s1 + $0x114] sm:$0xf]
  %v111 = vld [vmem:[%s1 + $0x118] sm:$0xf]
  %v112 = vld [vmem:[%s1 + $0x11c] sm:$0xf]
  %v113 = vld [vmem:[%s1 + $0x120] sm:$0xf]
  %v114 = vld [vmem:[%s1 + $0x124] sm:$0xf]
  %v115 = vld [vmem:[%s1 + $0x128] sm:$0xf]
  %v116 = vld [vmem:[%s1 + $0x12c] sm:$0xf]
  %v117 = vld [vmem:[%s1 + $0x130] sm:$0xf]
  %v118 = vld [vmem:[%s1 + $0x134] sm:$0xf]
  %v119 = vld [vmem:[%s1 + $0x138] sm:$0xf]
  %v120 = vld [vmem:[%s1 + $0x13c] sm:$0xf]
  %v121 = vld [vmem:[%s1 + $0x140] sm:$0xf]
  %v122 = vld [vmem:[%s1 + $0x144] sm:$0xf]
  %v123 = vld [vmem:[%s1 + $0x148] sm:$0xf]
  %v124 = vld [vmem:[%s1 + $0x14c] sm:$0xf]
  %v125 = vld [vmem:[%s1 + $0x150] sm:$0xf]
  %v126 = vld [vmem:[%s1 + $0x154] sm:$0xf]
  %v127 = vld [vmem:[%s1 + $0x158] sm:$0xf]
  %v128 = vld [vmem:[%s1 + $0x15c] sm:$0xf]
  %v129 = vld [vmem:[%s1 + $0x160] sm:$0xf]
  %v130 = vld [vmem:[%s1 + $0x164] sm:$0xf]
  %v131 = vld [vmem:[%s1 + $0x168] sm:$0xf]
  %v132 = vld [vmem:[%s1 + $0x16c] sm:$0xf]
  %v133 = vld [vmem:[%s1 + $0x170] sm:$0xf]
  %v134 = vld [vmem:[%s1 + $0x174] sm:$0xf]
  %v135 = vld [vmem:[%s1 + $0x178] sm:$0xf]
  %v136 = vld [vmem:[%s1 + $0x17c] sm:$0xf]
  %v137 = vld [vmem:[%s1 + $0x180] sm:$0xf]
  %v138 = vld [vmem:[%s1 + $0x184] sm:$0xf]
  %v139 = vld [vmem:[%s2] sm:$0x1]
  %v141 = vlaneseq
  %v142 = vshrl.u32 %v141, 7
  %v143 = vsub.s32 0, %v142
  %v144 = vrot.slane %v139, %v143
  %v244 = vunpack.c.l.b16 %v41
  %v245 = vunpack.c.l.b16 %v42
  %v246 = vunpack.c.l.b16 %v43
  %v247 = vunpack.c.l.b16 %v44
  %v248 = vunpack.c.l.b16 %v45
  %v249 = vunpack.c.l.b16 %v46
  %v250 = vunpack.c.l.b16 %v47
  %v251 = vunpack.c.l.b16 %v48
  %v252 = vunpack.c.l.b16 %v49
  %v253 = vunpack.c.l.b16 %v50
  %v254 = vunpack.c.l.b16 %v51
  %v255 = vunpack.c.l.b16 %v52
  %v256 = vunpack.c.l.b16 %v53
  %v257 = vunpack.c.l.b16 %v54
  %v258 = vunpack.c.l.b16 %v55
  %v259 = vunpack.c.l.b16 %v56
  %v260 = vunpack.c.l.b16 %v57
  %v261 = vunpack.c.l.b16 %v58
  %v262 = vunpack.c.l.b16 %v59
  %v263 = vunpack.c.l.b16 %v60
  %v264 = vunpack.c.l.b16 %v61
  %v265 = vunpack.c.l.b16 %v62
  %v266 = vunpack.c.l.b16 %v63
  %v267 = vunpack.c.l.b16 %v64
  %v268 = vunpack.c.l.b16 %v65
  %v269 = vunpack.c.l.b16 %v66
  %v270 = vunpack.c.l.b16 %v67
  %v271 = vunpack.c.l.b16 %v68
  %v272 = vunpack.c.l.b16 %v69
  %v273 = vunpack.c.l.b16 %v70
  %v274 = vunpack.c.l.b16 %v71
  %v275 = vunpack.c.l.b16 %v72
  %v276 = vunpack.c.l.b16 %v73
  %v277 = vunpack.c.l.b16 %v74
  %v278 = vunpack.c.l.b16 %v75
  %v279 = vunpack.c.l.b16 %v76
  %v280 = vunpack.c.l.b16 %v77
  %v281 = vunpack.c.l.b16 %v78
  %v282 = vunpack.c.l.b16 %v79
  %v283 = vunpack.c.l.b16 %v80
  %v284 = vunpack.c.l.b16 %v81
  %v285 = vunpack.c.l.b16 %v82
  %v286 = vunpack.c.l.b16 %v83
  %v287 = vunpack.c.l.b16 %v84
  %v288 = vunpack.c.l.b16 %v85
  %v289 = vunpack.c.l.b16 %v86
  %v290 = vunpack.c.l.b16 %v87
  %v291 = vunpack.c.l.b16 %v88
  %v292 = vunpack.c.l.b16 %v89
  %v293 = vunpack.c.l.b16 %v90
  %v294 = vunpack.c.l.b16 %v91
  %v295 = vunpack.c.l.b16 %v92
  %v296 = vunpack.c.l.b16 %v93
  %v297 = vunpack.c.l.b16 %v94
  %v298 = vunpack.c.l.b16 %v95
  %v299 = vunpack.c.l.b16 %v96
  %v300 = vunpack.c.l.b16 %v97
  %v301 = vunpack.c.l.b16 %v98
  %v302 = vunpack.c.l.b16 %v99
  %v303 = vunpack.c.l.b16 %v100
  %v304 = vunpack.c.l.b16 %v101
  %v305 = vunpack.c.l.b16 %v102
  %v306 = vunpack.c.l.b16 %v103
  %v307 = vunpack.c.l.b16 %v104
  %v308 = vunpack.c.l.b16 %v105
  %v309 = vunpack.c.l.b16 %v106
  %v310 = vunpack.c.l.b16 %v107
  %v311 = vunpack.c.l.b16 %v108
  %v312 = vunpack.c.l.b16 %v109
  %v313 = vunpack.c.l.b16 %v110
  %v314 = vunpack.c.l.b16 %v111
  %v315 = vunpack.c.l.b16 %v112
  %v316 = vunpack.c.l.b16 %v113
  %v317 = vunpack.c.l.b16 %v114
  %v318 = vunpack.c.l.b16 %v115
  %v319 = vunpack.c.l.b16 %v116
  %v320 = vunpack.c.l.b16 %v117
  %v321 = vunpack.c.l.b16 %v118
  %v322 = vunpack.c.l.b16 %v119
  %v323 = vunpack.c.l.b16 %v120
  %v324 = vunpack.c.l.b16 %v121
  %v325 = vunpack.c.l.b16 %v122
  %v326 = vunpack.c.l.b16 %v123
  %v327 = vunpack.c.l.b16 %v124
  %v328 = vunpack.c.l.b16 %v125
  %v329 = vunpack.c.l.b16 %v126
  %v330 = vunpack.c.l.b16 %v127
  %v331 = vunpack.c.l.b16 %v128
  %v332 = vunpack.c.l.b16 %v129
  %v333 = vunpack.c.l.b16 %v130
  %v334 = vunpack.c.l.b16 %v131
  %v335 = vunpack.c.l.b16 %v132
  %v336 = vunpack.c.l.b16 %v133
  %v337 = vunpack.c.l.b16 %v134
  %v338 = vunpack.c.l.b16 %v135
  %v339 = vunpack.c.l.b16 %v136
  %v340 = vunpack.c.l.b16 %v137
  %v341 = vunpack.c.l.b16 %v138
  %v342 = vpack.c.b16 %v245, %v244
  %v343 = vpack.c.b16 %v247, %v246
  %v344 = vpack.c.b16 %v249, %v248
  %v345 = vpack.c.b16 %v251, %v250
  %v346 = vpack.c.b16 %v253, %v252
  %v347 = vpack.c.b16 %v255, %v254
  %v348 = vpack.c.b16 %v257, %v256
  %v349 = vpack.c.b16 %v259, %v258
  %v350 = vpack.c.b16 %v261, %v260
  %v351 = vpack.c.b16 %v263, %v262
  %v352 = vpack.c.b16 %v265, %v264
  %v353 = vpack.c.b16 %v267, %v266
  %v354 = vpack.c.b16 %v269, %v268
  %v355 = vpack.c.b16 %v271, %v270
  %v356 = vpack.c.b16 %v273, %v272
  %v357 = vpack.c.b16 %v275, %v274
  %v358 = vpack.c.b16 %v277, %v276
  %v359 = vpack.c.b16 %v279, %v278
  %v360 = vpack.c.b16 %v281, %v280
  %v361 = vpack.c.b16 %v283, %v282
  %v362 = vpack.c.b16 %v285, %v284
  %v363 = vpack.c.b16 %v287, %v286
  %v364 = vpack.c.b16 %v289, %v288
  %v365 = vpack.c.b16 %v291, %v290
  %v366 = vpack.c.b16 %v293, %v292
  %v367 = vpack.c.b16 %v295, %v294
  %v368 = vpack.c.b16 %v297, %v296
  %v369 = vpack.c.b16 %v299, %v298
  %v370 = vpack.c.b16 %v301, %v300
  %v371 = vpack.c.b16 %v303, %v302
  %v372 = vpack.c.b16 %v305, %v304
  %v373 = vpack.c.b16 %v307, %v306
  %v374 = vpack.c.b16 %v309, %v308
  %v375 = vpack.c.b16 %v311, %v310
  %v376 = vpack.c.b16 %v313, %v312
  %v377 = vpack.c.b16 %v315, %v314
  %v378 = vpack.c.b16 %v317, %v316
  %v379 = vpack.c.b16 %v319, %v318
  %v380 = vpack.c.b16 %v321, %v320
  %v381 = vpack.c.b16 %v323, %v322
  %v382 = vpack.c.b16 %v325, %v324
  %v383 = vpack.c.b16 %v327, %v326
  %v384 = vpack.c.b16 %v329, %v328
  %v385 = vpack.c.b16 %v331, %v330
  %v386 = vpack.c.b16 %v333, %v332
  %v387 = vpack.c.b16 %v335, %v334
  %v388 = vpack.c.b16 %v337, %v336
  %v389 = vpack.c.b16 %v339, %v338
  %v390 = vpack.c.b16 %v341, %v340
  %vm440 = vcmask 130048
  %v442 = vsel %vm440, %v40, 0
  %444 = vmatprep.subr.bf16.mxu0 0
  %445 = vmatpush1.bf16.msra.mxu0 %v342
  %446 = vmatprep.subr.bf16.mxu0 0
  %447 = vmatpush1.bf16.msra.mxu0 %v343
  %448 = vmatprep.subr.bf16.mxu0 0
  %449 = vmatpush1.bf16.msra.mxu0 %v344
  %450 = vmatprep.subr.bf16.mxu0 0
  %451 = vmatpush1.bf16.msra.mxu0 %v345
  %452 = vmatprep.subr.bf16.mxu0 0
  %453 = vmatpush1.bf16.msra.mxu0 %v346
  %454 = vmatprep.subr.bf16.mxu0 0
  %455 = vmatpush1.bf16.msra.mxu0 %v347
  %456 = vmatprep.subr.bf16.mxu0 0
  %457 = vmatpush1.bf16.msra.mxu0 %v348
  %458 = vmatprep.subr.bf16.mxu0 0
  %459 = vmatpush1.bf16.msra.mxu0 %v349
  %460 = vmatprep.subr.bf16.mxu0 0
  %461 = vmatpush1.bf16.msra.mxu0 %v350
  %462 = vmatprep.subr.bf16.mxu0 0
  %463 = vmatpush1.bf16.msra.mxu0 %v351
  %464 = vmatprep.subr.bf16.mxu0 0
  %465 = vmatpush1.bf16.msra.mxu0 %v352
  %466 = vmatprep.subr.bf16.mxu0 0
  %467 = vmatpush1.bf16.msra.mxu0 %v353
  %468 = vmatprep.subr.bf16.mxu0 0
  %469 = vmatpush1.bf16.msra.mxu0 %v354
  %470 = vmatprep.subr.bf16.mxu0 0
  %471 = vmatpush1.bf16.msra.mxu0 %v355
  %472 = vmatprep.subr.bf16.mxu0 0
  %473 = vmatpush1.bf16.msra.mxu0 %v356
  %474 = vmatprep.subr.bf16.mxu0 0
  %475 = vmatpush1.bf16.msra.mxu0 %v357
  %476 = vmatprep.mubr.bf16.mxu0 %v35
  %477 = vmatmul.mubr.bf16.gmra.mrb[0].mxu0 %v34
  %v478 = vpop.f32.mrb[0].mxu0
  %v479 = vadd.f32 %v144, %v478
  %v480 = vpop.f32.mrb[0].mxu0
  %v481 = vpop.f32.mrb[0].mxu0
  %v482 = vpop.f32.mrb[0].mxu0
  %483 = vdwg.mxu0
  %484 = vmatprep.subr.bf16.mxu0 0
  %485 = vmatpush1.bf16.msra.mxu0 %v358
  %486 = vmatprep.subr.bf16.mxu0 0
  %487 = vmatpush1.bf16.msra.mxu0 %v359
  %488 = vmatprep.subr.bf16.mxu0 0
  %489 = vmatpush1.bf16.msra.mxu0 %v360
  %490 = vmatprep.subr.bf16.mxu0 0
  %491 = vmatpush1.bf16.msra.mxu0 %v361
  %492 = vmatprep.subr.bf16.mxu0 0
  %493 = vmatpush1.bf16.msra.mxu0 %v362
  %494 = vmatprep.subr.bf16.mxu0 0
  %495 = vmatpush1.bf16.msra.mxu0 %v363
  %496 = vmatprep.subr.bf16.mxu0 0
  %497 = vmatpush1.bf16.msra.mxu0 %v364
  %498 = vmatprep.subr.bf16.mxu0 0
  %499 = vmatpush1.bf16.msra.mxu0 %v365
  %500 = vmatprep.subr.bf16.mxu0 0
  %501 = vmatpush1.bf16.msra.mxu0 %v366
  %502 = vmatprep.subr.bf16.mxu0 0
  %503 = vmatpush1.bf16.msra.mxu0 %v367
  %504 = vmatprep.subr.bf16.mxu0 0
  %505 = vmatpush1.bf16.msra.mxu0 %v368
  %506 = vmatprep.subr.bf16.mxu0 0
  %507 = vmatpush1.bf16.msra.mxu0 %v369
  %508 = vmatprep.subr.bf16.mxu0 0
  %509 = vmatpush1.bf16.msra.mxu0 %v370
  %510 = vmatprep.subr.bf16.mxu0 0
  %511 = vmatpush1.bf16.msra.mxu0 %v371
  %512 = vmatprep.subr.bf16.mxu0 0
  %513 = vmatpush1.bf16.msra.mxu0 %v372
  %514 = vmatprep.subr.bf16.mxu0 0
  %515 = vmatpush1.bf16.msra.mxu0 %v373
  %516 = vmatprep.mubr.bf16.mxu0 %v37
  %517 = vmatmul.mubr.bf16.gmra.mrb[0].mxu0 %v36
  %v518 = vpop.f32.mrb[0].mxu0
  %v519 = vadd.f32 %v479, %v518
  %v520 = vpop.f32.mrb[0].mxu0
  %v521 = vpop.f32.mrb[0].mxu0
  %v522 = vpop.f32.mrb[0].mxu0
  %523 = vdwg.mxu0
  %524 = vmatprep.subr.bf16.mxu0 0
  %525 = vmatpush1.bf16.msra.mxu0 %v374
  %526 = vmatprep.subr.bf16.mxu0 0
  %527 = vmatpush1.bf16.msra.mxu0 %v375
  %528 = vmatprep.subr.bf16.mxu0 0
  %529 = vmatpush1.bf16.msra.mxu0 %v376
  %530 = vmatprep.subr.bf16.mxu0 0
  %531 = vmatpush1.bf16.msra.mxu0 %v377
  %532 = vmatprep.subr.bf16.mxu0 0
  %533 = vmatpush1.bf16.msra.mxu0 %v378
  %534 = vmatprep.subr.bf16.mxu0 0
  %535 = vmatpush1.bf16.msra.mxu0 %v379
  %536 = vmatprep.subr.bf16.mxu0 0
  %537 = vmatpush1.bf16.msra.mxu0 %v380
  %538 = vmatprep.subr.bf16.mxu0 0
  %539 = vmatpush1.bf16.msra.mxu0 %v381
  %540 = vmatprep.subr.bf16.mxu0 0
  %541 = vmatpush1.bf16.msra.mxu0 %v382
  %542 = vmatprep.subr.bf16.mxu0 0
  %543 = vmatpush1.bf16.msra.mxu0 %v383
  %544 = vmatprep.subr.bf16.mxu0 0
  %545 = vmatpush1.bf16.msra.mxu0 %v384
  %546 = vmatprep.subr.bf16.mxu0 0
  %547 = vmatpush1.bf16.msra.mxu0 %v385
  %548 = vmatprep.subr.bf16.mxu0 0
  %549 = vmatpush1.bf16.msra.mxu0 %v386
  %550 = vmatprep.subr.bf16.mxu0 0
  %551 = vmatpush1.bf16.msra.mxu0 %v387
  %552 = vmatprep.subr.bf16.mxu0 0
  %553 = vmatpush1.bf16.msra.mxu0 %v388
  %554 = vmatprep.subr.bf16.mxu0 0
  %555 = vmatpush1.bf16.msra.mxu0 %v389
  %556 = vmatprep.mubr.bf16.mxu0 %v39
  %557 = vmatmul.mubr.bf16.gmra.mrb[0].mxu0 %v38
  %v558 = vpop.f32.mrb[0].mxu0
  %v559 = vadd.f32 %v519, %v558
  %v560 = vpop.f32.mrb[0].mxu0
  %v561 = vpop.f32.mrb[0].mxu0
  %v562 = vpop.f32.mrb[0].mxu0
  %563 = vdwg.mxu0
  %564 = vmatprep.subr.bf16.mxu0 0
  %565 = vmatpush1.bf16.msra.mxu0 %v390
  %566 = vmatprep.subr.bf16.mxu0 0
  %567 = vmatpush1.bf16.msra.mxu0 0
  %568 = vmatprep.subr.bf16.mxu0 0
  %569 = vmatpush1.bf16.msra.mxu0 0
  %570 = vmatprep.subr.bf16.mxu0 0
  %571 = vmatpush1.bf16.msra.mxu0 0
  %572 = vmatprep.subr.bf16.mxu0 0
  %573 = vmatpush1.bf16.msra.mxu0 0
  %574 = vmatprep.subr.bf16.mxu0 0
  %575 = vmatpush1.bf16.msra.mxu0 0
  %576 = vmatprep.subr.bf16.mxu0 0
  %577 = vmatpush1.bf16.msra.mxu0 0
  %578 = vmatprep.subr.bf16.mxu0 0
  %579 = vmatpush1.bf16.msra.mxu0 0
  %580 = vmatprep.subr.bf16.mxu0 0
  %581 = vmatpush1.bf16.msra.mxu0 0
  %582 = vmatprep.subr.bf16.mxu0 0
  %583 = vmatpush1.bf16.msra.mxu0 0
  %584 = vmatprep.subr.bf16.mxu0 0
  %585 = vmatpush1.bf16.msra.mxu0 0
  %586 = vmatprep.subr.bf16.mxu0 0
  %587 = vmatpush1.bf16.msra.mxu0 0
  %588 = vmatprep.subr.bf16.mxu0 0
  %589 = vmatpush1.bf16.msra.mxu0 0
  %590 = vmatprep.subr.bf16.mxu0 0
  %591 = vmatpush1.bf16.msra.mxu0 0
  %592 = vmatprep.subr.bf16.mxu0 0
  %593 = vmatpush1.bf16.msra.mxu0 0
  %594 = vmatprep.subr.bf16.mxu0 0
  %595 = vmatpush1.bf16.msra.mxu0 0
  %596 = vmatprep.mubr.bf16.mxu0 0
  %597 = vmatmul.mubr.bf16.gmra.mrb[0].mxu0 %v442
  %v598 = vpop.f32.mrb[0].mxu0
  %v599 = vadd.f32 %v559, %v598
  %v600 = vpop.f32.mrb[0].mxu0
  %v601 = vpop.f32.mrb[0].mxu0
  %v602 = vpop.f32.mrb[0].mxu0
  %603 = vdwg.mxu0
  %v604 = vmax.f32 %v599, 0.0
  %v605 = vpack.c.bf16 %v604, %v604
  %v606 = vld [vmem:[%s3] sm:$0xf]
  %v607 = vld [vmem:[%s3 + $0x4] sm:$0xf]
  %v608 = vld [vmem:[%s3 + $0x8] sm:$0xf]
  %v609 = vld [vmem:[%s3 + $0xc] sm:$0xf]
  %v610 = vld [vmem:[%s3 + $0x10] sm:$0xf]
  %v611 = vld [vmem:[%s3 + $0x14] sm:$0xf]
  %v612 = vld [vmem:[%s3 + $0x18] sm:$0xf]
  %v613 = vld [vmem:[%s3 + $0x1c] sm:$0xf]
  %v614 = vld [vmem:[%s3 + $0x20] sm:$0xf]
  %v615 = vld [vmem:[%s3 + $0x24] sm:$0xf]
  %v616 = vld [vmem:[%s3 + $0x28] sm:$0xf]
  %v617 = vld [vmem:[%s3 + $0x2c] sm:$0xf]
  %v618 = vld [vmem:[%s3 + $0x30] sm:$0xf]
  %v619 = vld [vmem:[%s3 + $0x34] sm:$0xf]
  %v620 = vld [vmem:[%s3 + $0x38] sm:$0xf]
  %v621 = vld [vmem:[%s3 + $0x3c] sm:$0xf]
  %v622 = vld [vmem:[%s4] sm:$0x1]
  %v624 = vlaneseq
  %v625 = vshrl.u32 %v624, 7
  %v626 = vsub.s32 0, %v625
  %v627 = vrot.slane %v622, %v626
  %v645 = vunpack.c.l.b16 %v606
  %v646 = vunpack.c.l.b16 %v607
  %v647 = vunpack.c.l.b16 %v608
  %v648 = vunpack.c.l.b16 %v609
  %v649 = vunpack.c.l.b16 %v610
  %v650 = vunpack.c.l.b16 %v611
  %v651 = vunpack.c.l.b16 %v612
  %v652 = vunpack.c.l.b16 %v613
  %v653 = vunpack.c.l.b16 %v614
  %v654 = vunpack.c.l.b16 %v615
  %v655 = vunpack.c.l.b16 %v616
  %v656 = vunpack.c.l.b16 %v617
  %v657 = vunpack.c.l.b16 %v618
  %v658 = vunpack.c.l.b16 %v619
  %v659 = vunpack.c.l.b16 %v620
  %v660 = vunpack.c.l.b16 %v621
  %v661 = vpack.c.b16 %v646, %v645
  %v662 = vpack.c.b16 %v648, %v647
  %v663 = vpack.c.b16 %v650, %v649
  %v664 = vpack.c.b16 %v652, %v651
  %v665 = vpack.c.b16 %v654, %v653
  %v666 = vpack.c.b16 %v656, %v655
  %v667 = vpack.c.b16 %v658, %v657
  %v668 = vpack.c.b16 %v660, %v659
  %677 = vmatprep.subr.bf16.mxu0 0
  %678 = vmatpush1.bf16.msra.mxu0 %v661
  %679 = vmatprep.subr.bf16.mxu0 0
  %680 = vmatpush1.bf16.msra.mxu0 %v662
  %681 = vmatprep.subr.bf16.mxu0 0
  %682 = vmatpush1.bf16.msra.mxu0 %v663
  %683 = vmatprep.subr.bf16.mxu0 0
  %684 = vmatpush1.bf16.msra.mxu0 %v664
  %685 = vmatprep.subr.bf16.mxu0 0
  %686 = vmatpush1.bf16.msra.mxu0 %v665
  %687 = vmatprep.subr.bf16.mxu0 0
  %688 = vmatpush1.bf16.msra.mxu0 %v666
  %689 = vmatprep.subr.bf16.mxu0 0
  %690 = vmatpush1.bf16.msra.mxu0 %v667
  %691 = vmatprep.subr.bf16.mxu0 0
  %692 = vmatpush1.bf16.msra.mxu0 %v668
  %693 = vmatprep.subr.bf16.mxu0 0
  %694 = vmatpush1.bf16.msra.mxu0 0
  %695 = vmatprep.subr.bf16.mxu0 0
  %696 = vmatpush1.bf16.msra.mxu0 0
  %697 = vmatprep.subr.bf16.mxu0 0
  %698 = vmatpush1.bf16.msra.mxu0 0
  %699 = vmatprep.subr.bf16.mxu0 0
  %700 = vmatpush1.bf16.msra.mxu0 0
  %701 = vmatprep.subr.bf16.mxu0 0
  %702 = vmatpush1.bf16.msra.mxu0 0
  %703 = vmatprep.subr.bf16.mxu0 0
  %704 = vmatpush1.bf16.msra.mxu0 0
  %705 = vmatprep.subr.bf16.mxu0 0
  %706 = vmatpush1.bf16.msra.mxu0 0
  %707 = vmatprep.subr.bf16.mxu0 0
  %708 = vmatpush1.bf16.msra.mxu0 0
  %709 = vmatprep.mubr.bf16.mxu0 0
  %710 = vmatmul.mubr.bf16.gmra.mrb[0].mxu0 %v605
  %v711 = vpop.f32.mrb[0].mxu0
  %v712 = vadd.f32 %v627, %v711
  %v713 = vpop.f32.mrb[0].mxu0
  %v714 = vpop.f32.mrb[0].mxu0
  %v715 = vpop.f32.mrb[0].mxu0
  %716 = vdwg.mxu0
  %v717 = vmax.f32 %v712, 0.0
  %v718 = vpack.c.bf16 %v717, %v717
  %s719 = scalar_lea.vmem %s3, 64
  %v720 = vld [vmem:[%s719] sm:$0xf]
  %v721 = vld [vmem:[%s719 + $0x4] sm:$0xf]
  %v722 = vld [vmem:[%s719 + $0x8] sm:$0xf]
  %v723 = vld [vmem:[%s719 + $0xc] sm:$0xf]
  %v724 = vld [vmem:[%s719 + $0x10] sm:$0xf]
  %v725 = vld [vmem:[%s719 + $0x14] sm:$0xf]
  %v726 = vld [vmem:[%s719 + $0x18] sm:$0xf]
  %v727 = vld [vmem:[%s719 + $0x1c] sm:$0xf]
  %v728 = vld [vmem:[%s719 + $0x20] sm:$0xf]
  %v729 = vld [vmem:[%s719 + $0x24] sm:$0xf]
  %v730 = vld [vmem:[%s719 + $0x28] sm:$0xf]
  %v731 = vld [vmem:[%s719 + $0x2c] sm:$0xf]
  %v732 = vld [vmem:[%s719 + $0x30] sm:$0xf]
  %v733 = vld [vmem:[%s719 + $0x34] sm:$0xf]
  %v734 = vld [vmem:[%s719 + $0x38] sm:$0xf]
  %v735 = vld [vmem:[%s719 + $0x3c] sm:$0xf]
  %s736 = scalar_lea.vmem %s4, 1
  %v737 = vld [vmem:[%s736] sm:$0x1]
  %v739 = vlaneseq
  %v740 = vshrl.u32 %v739, 7
  %v741 = vsub.s32 0, %v740
  %v742 = vrot.slane %v737, %v741
  %v760 = vunpack.c.l.b16 %v720
  %v761 = vunpack.c.l.b16 %v721
  %v762 = vunpack.c.l.b16 %v722
  %v763 = vunpack.c.l.b16 %v723
  %v764 = vunpack.c.l.b16 %v724
  %v765 = vunpack.c.l.b16 %v725
  %v766 = vunpack.c.l.b16 %v726
  %v767 = vunpack.c.l.b16 %v727
  %v768 = vunpack.c.l.b16 %v728
  %v769 = vunpack.c.l.b16 %v729
  %v770 = vunpack.c.l.b16 %v730
  %v771 = vunpack.c.l.b16 %v731
  %v772 = vunpack.c.l.b16 %v732
  %v773 = vunpack.c.l.b16 %v733
  %v774 = vunpack.c.l.b16 %v734
  %v775 = vunpack.c.l.b16 %v735
  %v776 = vpack.c.b16 %v761, %v760
  %v777 = vpack.c.b16 %v763, %v762
  %v778 = vpack.c.b16 %v765, %v764
  %v779 = vpack.c.b16 %v767, %v766
  %v780 = vpack.c.b16 %v769, %v768
  %v781 = vpack.c.b16 %v771, %v770
  %v782 = vpack.c.b16 %v773, %v772
  %v783 = vpack.c.b16 %v775, %v774
  %792 = vmatprep.subr.bf16.mxu0 0
  %793 = vmatpush1.bf16.msra.mxu0 %v776
  %794 = vmatprep.subr.bf16.mxu0 0
  %795 = vmatpush1.bf16.msra.mxu0 %v777
  %796 = vmatprep.subr.bf16.mxu0 0
  %797 = vmatpush1.bf16.msra.mxu0 %v778
  %798 = vmatprep.subr.bf16.mxu0 0
  %799 = vmatpush1.bf16.msra.mxu0 %v779
  %800 = vmatprep.subr.bf16.mxu0 0
  %801 = vmatpush1.bf16.msra.mxu0 %v780
  %802 = vmatprep.subr.bf16.mxu0 0
  %803 = vmatpush1.bf16.msra.mxu0 %v781
  %804 = vmatprep.subr.bf16.mxu0 0
  %805 = vmatpush1.bf16.msra.mxu0 %v782
  %806 = vmatprep.subr.bf16.mxu0 0
  %807 = vmatpush1.bf16.msra.mxu0 %v783
  %808 = vmatprep.subr.bf16.mxu0 0
  %809 = vmatpush1.bf16.msra.mxu0 0
  %810 = vmatprep.subr.bf16.mxu0 0
  %811 = vmatpush1.bf16.msra.mxu0 0
  %812 = vmatprep.subr.bf16.mxu0 0
  %813 = vmatpush1.bf16.msra.mxu0 0
  %814 = vmatprep.subr.bf16.mxu0 0
  %815 = vmatpush1.bf16.msra.mxu0 0
  %816 = vmatprep.subr.bf16.mxu0 0
  %817 = vmatpush1.bf16.msra.mxu0 0
  %818 = vmatprep.subr.bf16.mxu0 0
  %819 = vmatpush1.bf16.msra.mxu0 0
  %820 = vmatprep.subr.bf16.mxu0 0
  %821 = vmatpush1.bf16.msra.mxu0 0
  %822 = vmatprep.subr.bf16.mxu0 0
  %823 = vmatpush1.bf16.msra.mxu0 0
  %824 = vmatprep.mubr.bf16.mxu0 0
  %825 = vmatmul.mubr.bf16.gmra.mrb[0].mxu0 %v718
  %v826 = vpop.f32.mrb[0].mxu0
  %v827 = vadd.f32 %v742, %v826
  %v828 = vpop.f32.mrb[0].mxu0
  %v829 = vpop.f32.mrb[0].mxu0
  %v830 = vpop.f32.mrb[0].mxu0
  %831 = vdwg.mxu0
  %v832 = vmax.f32 %v827, 0.0
  %v833 = vpack.c.bf16 %v832, %v832
  %v834 = vld [vmem:[%s5] sm:$0xf]
  %v835 = vld [vmem:[%s5 + $0x4] sm:$0xf]
  %v836 = vld [vmem:[%s5 + $0x8] sm:$0xf]
  %v837 = vld [vmem:[%s5 + $0xc] sm:$0xf]
  %v838 = vld [vmem:[%s5 + $0x10] sm:$0xf]
  %v839 = vld [vmem:[%s5 + $0x14] sm:$0xf]
  %v840 = vld [vmem:[%s5 + $0x18] sm:$0xf]
  %v841 = vld [vmem:[%s5 + $0x1c] sm:$0xf]
  %v842 = vld [vmem:[%s5 + $0x20] sm:$0xf]
  %v843 = vld [vmem:[%s5 + $0x24] sm:$0xf]
  %v844 = vld [vmem:[%s5 + $0x28] sm:$0xf]
  %v845 = vld [vmem:[%s5 + $0x2c] sm:$0xf]
  %v846 = vld [vmem:[%s5 + $0x30] sm:$0xf]
  %v847 = vld [vmem:[%s5 + $0x34] sm:$0xf]
  %v848 = vld [vmem:[%s5 + $0x38] sm:$0xf]
  %v849 = vld [vmem:[%s5 + $0x3c] sm:$0xf]
  %v850 = vld [vmem:[%s6] sm:$0x1]
  %v852 = vlaneseq
  %v853 = vshrl.u32 %v852, 7
  %v854 = vsub.s32 0, %v853
  %v855 = vrot.slane %v850, %v854
  %v873 = vunpack.c.l.b16 %v834
  %v874 = vunpack.c.l.b16 %v835
  %v875 = vunpack.c.l.b16 %v836
  %v876 = vunpack.c.l.b16 %v837
  %v877 = vunpack.c.l.b16 %v838
  %v878 = vunpack.c.l.b16 %v839
  %v879 = vunpack.c.l.b16 %v840
  %v880 = vunpack.c.l.b16 %v841
  %v881 = vunpack.c.l.b16 %v842
  %v882 = vunpack.c.l.b16 %v843
  %v883 = vunpack.c.l.b16 %v844
  %v884 = vunpack.c.l.b16 %v845
  %v885 = vunpack.c.l.b16 %v846
  %v886 = vunpack.c.l.b16 %v847
  %v887 = vunpack.c.l.b16 %v848
  %v888 = vunpack.c.l.b16 %v849
  %v889 = vpack.c.b16 %v874, %v873
  %v890 = vpack.c.b16 %v876, %v875
  %v891 = vpack.c.b16 %v878, %v877
  %v892 = vpack.c.b16 %v880, %v879
  %v893 = vpack.c.b16 %v882, %v881
  %v894 = vpack.c.b16 %v884, %v883
  %v895 = vpack.c.b16 %v886, %v885
  %v896 = vpack.c.b16 %v888, %v887
  %905 = vmatprep.subr.bf16.mxu0 0
  %906 = vmatpush1.bf16.msra.mxu0 %v889
  %907 = vmatprep.subr.bf16.mxu0 0
  %908 = vmatpush1.bf16.msra.mxu0 %v890
  %909 = vmatprep.subr.bf16.mxu0 0
  %910 = vmatpush1.bf16.msra.mxu0 %v891
  %911 = vmatprep.subr.bf16.mxu0 0
  %912 = vmatpush1.bf16.msra.mxu0 %v892
  %913 = vmatprep.subr.bf16.mxu0 0
  %914 = vmatpush1.bf16.msra.mxu0 %v893
  %915 = vmatprep.subr.bf16.mxu0 0
  %916 = vmatpush1.bf16.msra.mxu0 %v894
  %917 = vmatprep.subr.bf16.mxu0 0
  %918 = vmatpush1.bf16.msra.mxu0 %v895
  %919 = vmatprep.subr.bf16.mxu0 0
  %920 = vmatpush1.bf16.msra.mxu0 %v896
  %921 = vmatprep.subr.bf16.mxu0 0
  %922 = vmatpush1.bf16.msra.mxu0 0
  %923 = vmatprep.subr.bf16.mxu0 0
  %924 = vmatpush1.bf16.msra.mxu0 0
  %925 = vmatprep.subr.bf16.mxu0 0
  %926 = vmatpush1.bf16.msra.mxu0 0
  %927 = vmatprep.subr.bf16.mxu0 0
  %928 = vmatpush1.bf16.msra.mxu0 0
  %929 = vmatprep.subr.bf16.mxu0 0
  %930 = vmatpush1.bf16.msra.mxu0 0
  %931 = vmatprep.subr.bf16.mxu0 0
  %932 = vmatpush1.bf16.msra.mxu0 0
  %933 = vmatprep.subr.bf16.mxu0 0
  %934 = vmatpush1.bf16.msra.mxu0 0
  %935 = vmatprep.subr.bf16.mxu0 0
  %936 = vmatpush1.bf16.msra.mxu0 0
  %937 = vmatprep.mubr.bf16.mxu0 0
  %938 = vmatmul.mubr.bf16.gmra.mrb[0].mxu0 %v833
  %v939 = vpop.f32.mrb[0].mxu0
  %v940 = vadd.f32 %v855, %v939
  %v941 = vpop.f32.mrb[0].mxu0
  %v942 = vpop.f32.mrb[0].mxu0
  %v943 = vpop.f32.mrb[0].mxu0
  %944 = vdwg.mxu0
  %v945 = vpack.c.bf16 %v940, %v940
  %946 = vst [vmem:[%s7] sm:$0xf] %v945
  // Predicated region
  $region30: #{net_forward.1} parent=0 // pred_check
    _
  $region31: #{net_forward.1} parent=0 // pred_check_branch
    %948 = sbr.rel (0) target = $region33
  $region32: #{net_forward.1} parent=0 // pred_region
    _
  $region33: #{net_forward.1} parent=0 // pred_fallthru
    _
  // Predicated region
  $region34: #{net_forward.1} parent=0 // pred_check
    _
  $region35: #{net_forward.1} parent=0 // pred_check_branch
    %950 = sbr.rel (0) target = $region37
  $region36: #{net_forward.1} parent=0 // pred_region
    _
  $region37: #{net_forward.1} parent=0 // pred_fallthru
    _

</llo_original>
